<compile_context>
chip_gen: v7x
topology: tpu7x:2x2x1
jax: 0.10.0
libtpu: 0.0.40
codegen_flags: <defaults>
</compile_context>

<pallas_src>
import math

import jax
import jax.numpy as jnp
from jax.experimental import pallas as pl
from jax.experimental.pallas import tpu as pltpu


_BN_EPS = 1e-5
_K_RESIDENT_MAX = 4096                    # keep W^T fully resident up to this d_in
_FUSED_VMEM_BUDGET = 40 * 1024 * 1024     # headroom under v7x's 64 MiB per-TC VMEM


def _round_up(x, m):
    return ((x + m - 1) // m) * m


def _largest_tile(total, cap, align):
    """Largest divisor of `total` that is <= cap and a multiple of `align`;
    falls back to the full extent if no such divisor exists."""
    if total <= cap:
        return total
    t = (cap // align) * align
    while t >= align:
        if total % t == 0:
            return t
        t -= align
    # TODO(synk): pad + mask instead of full-extent fallback for prime/odd dims.
    return total


def _vmem_limit(est_bytes):
    # Explicit scoped-VMEM limit: above v5e's 16 MiB default, below v7x's
    # 64 MiB physical per-TC capacity.
    return int(min(64 * 1024 * 1024, max(16 * 1024 * 1024, 2 * est_bytes)))


# ---------------------------------------------------------------------------
# One-time parameter preparation (outside the per-call path)
# ---------------------------------------------------------------------------
def prepare_mi_projector_params(params):
    """Transpose W to (d_in, d_out) and pad the feature axis to a lane multiple."""
    w = params["w"].astype(jnp.float32)            # (d_out, d_in) like nn.Linear
    d_out, d_in = w.shape
    # TODO(synk): pad to 256 on v6e/v7x to fill the 256-wide MXU.
    d_out_p = max(_round_up(d_out, 128), 128)
    pad = d_out_p - d_out
    wt = jnp.pad(jnp.transpose(w), ((0, 0), (0, pad)))                       # (d_in, d_out_p)
    b = jnp.pad(params["b"].astype(jnp.float32), (0, pad)).reshape(1, d_out_p)
    # gamma/beta padded with zeros -> padded columns yield h == 0 (later masked).
    gamma = jnp.pad(params["gamma"].astype(jnp.float32), (0, pad)).reshape(1, d_out_p)
    beta = jnp.pad(params["beta"].astype(jnp.float32), (0, pad)).reshape(1, d_out_p)
    return {"wt": wt, "b": b, "gamma": gamma, "beta": beta,
            "d_in": d_in, "d_out": d_out, "d_out_p": d_out_p}


# ---------------------------------------------------------------------------
# Fused kernel: Linear -> (resident y) -> BatchNorm (two-pass stats) -> Softmax
# grid = (batch_tiles, k_tiles); serial ("arbitrary") because the epilogue at
# the last grid step depends on every previous batch tile.
# ---------------------------------------------------------------------------
def _make_fused_kernel(bt, d_out, d_out_p):
    need_mask = d_out_p > d_out

    def kernel(x_ref, w_ref, b_ref, g_ref, beta_ref, o_ref, acc_ref, y_ref):
        i = pl.program_id(0)
        nb = pl.num_programs(0)
        k = pl.program_id(1)
        nk = pl.num_programs(1)

        @pl.when(k == 0)
        def _init_acc():
            # Initialise the accumulator with the broadcast bias.
            acc_ref[...] = jnp.broadcast_to(b_ref[...], acc_ref.shape)

        acc_ref[...] += jnp.dot(x_ref[...], w_ref[...],
                                preferred_element_type=jnp.float32)

        @pl.when(k == nk - 1)
        def _store_tile():
            row = pl.multiple_of(i * bt, bt)
            y_ref[pl.ds(row, bt), :] = acc_ref[...]

        @pl.when(jnp.logical_and(i == nb - 1, k == nk - 1))
        def _epilogue():
            y = y_ref[...]                                        # (bs, d_out_p) f32, resident
            mean = jnp.mean(y, axis=0, keepdims=True)
            ctr = y - mean
            var = jnp.mean(ctr * ctr, axis=0, keepdims=True)      # biased, two-pass (no cancellation)
            scale = g_ref[...] * jax.lax.rsqrt(var + _BN_EPS)
            shift = beta_ref[...] - mean * scale
            h = y * scale + shift
            if need_mask:
                col = jax.lax.broadcasted_iota(jnp.int32, (1, d_out_p), 1)
                h = jnp.where(col < d_out, h, -jnp.inf)
            m = jnp.max(h, axis=-1, keepdims=True)
            e = jnp.exp(h - m)
            denom = jnp.sum(e, axis=-1, keepdims=True)
            o_ref[...] = (e * pl.reciprocal(denom, approx=False)).astype(o_ref.dtype)

    return kernel


# ---------------------------------------------------------------------------
# Fallback stage 1: fused Linear + (bias-shifted) batch statistics
# ---------------------------------------------------------------------------
def _linear_stats_kernel(x_ref, w_ref, b_ref, y_ref, s_ref, ss_ref, acc_ref):
    i = pl.program_id(0)
    k = pl.program_id(1)
    nk = pl.num_programs(1)

    @pl.when(k == 0)
    def _init_acc():
        acc_ref[...] = jnp.broadcast_to(b_ref[...], acc_ref.shape)

    acc_ref[...] += jnp.dot(x_ref[...], w_ref[...],
                            preferred_element_type=jnp.float32)

    @pl.when(k == nk - 1)
    def _finish():
        y = acc_ref[...]
        y_ref[...] = y.astype(y_ref.dtype)
        yc = y - b_ref[...]                 # bias-shifted -> less cancellation in var
        part_s = jnp.sum(yc, axis=0, keepdims=True)
        part_ss = jnp.sum(yc * yc, axis=0, keepdims=True)

        @pl.when(i == 0)
        def _first():
            s_ref[...] = part_s
            ss_ref[...] = part_ss

        @pl.when(i > 0)
        def _rest():
            s_ref[...] += part_s
            ss_ref[...] += part_ss


# ---------------------------------------------------------------------------
# Fallback stage 2: folded BatchNorm + Softmax ("parallel" batch axis)
# ---------------------------------------------------------------------------
def _make_bn_softmax_kernel(inv_bs, d_out, d_out_p):
    need_mask = d_out_p > d_out

    def kernel(y_ref, s_ref, ss_ref, b_ref, g_ref, beta_ref, o_ref):
        mean_c = s_ref[...] * inv_bs                      # E[y - b]
        ex2_c = ss_ref[...] * inv_bs                      # E[(y - b)^2]
        var = ex2_c - mean_c * mean_c                     # shift-invariant biased variance
        mean = mean_c + b_ref[...]
        scale = g_ref[...] * jax.lax.rsqrt(var + _BN_EPS)
        shift = beta_ref[...] - mean * scale
        h = y_ref[...] * scale + shift
        if need_mask:
            col = jax.lax.broadcasted_iota(jnp.int32, (1, d_out_p), 1)
            h = jnp.where(col < d_out, h, -jnp.inf)
        m = jnp.max(h, axis=-1, keepdims=True)
        e = jnp.exp(h - m)
        denom = jnp.sum(e, axis=-1, keepdims=True)
        o_ref[...] = (e * pl.reciprocal(denom, approx=False)).astype(o_ref.dtype)

    return kernel


# ---------------------------------------------------------------------------
# Wrapper
# ---------------------------------------------------------------------------
def mi_projector_forward(x, prepared, *, force_two_stage=False):
    """x: (bs, c, d) like PyTorch; returns softmax(BN(Linear(x.view(bs, c*d))))."""
    bs, c, d = x.shape
    d_in = c * d
    assert d_in == prepared["d_in"], (d_in, prepared["d_in"])
    d_out = prepared["d_out"]
    d_out_p = prepared["d_out_p"]
    wt, b, gamma, beta = (prepared["wt"], prepared["b"],
                          prepared["gamma"], prepared["beta"])

    x_flat = x.reshape(bs, d_in).astype(jnp.float32)      # view, no layout change
    # TODO(synk): bf16 matmul operands (f32 accumulation) behind a tolerance gate.

    bt = _largest_tile(bs, 512, 8)                        # batch tile (sublane aligned)
    kt = d_in if d_in <= _K_RESIDENT_MAX else _largest_tile(d_in, 1024, 128)
    nb = bs // bt
    nk = d_in // kt

    est_fused = 4 * (2 * bt * kt + 2 * kt * d_out_p + 6 * 8 * d_out_p
                     + 2 * bs * d_out_p + bt * d_out_p + bs * d_out_p)
    use_fused = (not force_two_stage) and est_fused <= _FUSED_VMEM_BUDGET

    if use_fused:
        out_p = pl.pallas_call(
            _make_fused_kernel(bt, d_out, d_out_p),
            out_shape=jax.ShapeDtypeStruct((bs, d_out_p), x.dtype),
            grid_spec=pltpu.PrefetchScalarGridSpec(
                num_scalar_prefetch=0,
                grid=(nb, nk),
                in_specs=[
                    pl.BlockSpec((bt, kt), lambda i, k: (i, k)),        # x tile
                    pl.BlockSpec((kt, d_out_p), lambda i, k: (k, 0)),   # W^T (resident if nk==1)
                    pl.BlockSpec((1, d_out_p), lambda i, k: (0, 0)),    # bias
                    pl.BlockSpec((1, d_out_p), lambda i, k: (0, 0)),    # gamma
                    pl.BlockSpec((1, d_out_p), lambda i, k: (0, 0)),    # beta
                ],
                out_specs=pl.BlockSpec((bs, d_out_p), lambda i, k: (0, 0)),  # resident output
                scratch_shapes=[
                    pltpu.VMEM((bt, d_out_p), jnp.float32),             # matmul accumulator
                    pltpu.VMEM((bs, d_out_p), jnp.float32),             # resident y
                ],
            ),
            compiler_params=pltpu.CompilerParams(
                dimension_semantics=("arbitrary", "arbitrary"),
                vmem_limit_bytes=_vmem_limit(est_fused)),
        )(x_flat, wt, b, gamma, beta)
        return out_p[:, :d_out] if d_out_p != d_out else out_p

    # ---- fallback: y does not fit VMEM -> two-stage path -------------------
    est_s1 = 4 * (2 * bt * kt + 2 * kt * d_out_p + 2 * bt * d_out_p
                  + bt * d_out_p + 6 * 8 * d_out_p)
    y, s, ss = pl.pallas_call(
        _linear_stats_kernel,
        out_shape=(
            jax.ShapeDtypeStruct((bs, d_out_p), jnp.float32),
            jax.ShapeDtypeStruct((1, d_out_p), jnp.float32),
            jax.ShapeDtypeStruct((1, d_out_p), jnp.float32),
        ),
        grid_spec=pltpu.PrefetchScalarGridSpec(
            num_scalar_prefetch=0,
            grid=(nb, nk),
            in_specs=[
                pl.BlockSpec((bt, kt), lambda i, k: (i, k)),
                pl.BlockSpec((kt, d_out_p), lambda i, k: (k, 0)),
                pl.BlockSpec((1, d_out_p), lambda i, k: (0, 0)),
            ],
            out_specs=(
                pl.BlockSpec((bt, d_out_p), lambda i, k: (i, 0)),
                pl.BlockSpec((1, d_out_p), lambda i, k: (0, 0)),
                pl.BlockSpec((1, d_out_p), lambda i, k: (0, 0)),
            ),
            scratch_shapes=[pltpu.VMEM((bt, d_out_p), jnp.float32)],
        ),
        # TODO(synk): per-tile partial sums would let the batch axis run
        # "parallel" across v7x's two TensorCores.
        compiler_params=pltpu.CompilerParams(
            dimension_semantics=("arbitrary", "arbitrary"),
            vmem_limit_bytes=_vmem_limit(est_s1)),
    )(x_flat, wt, b)

    est_s2 = 4 * (4 * bt * d_out_p + 12 * 8 * d_out_p)
    out_p = pl.pallas_call(
        _make_bn_softmax_kernel(1.0 / bs, d_out, d_out_p),
        out_shape=jax.ShapeDtypeStruct((bs, d_out_p), x.dtype),
        grid_spec=pltpu.PrefetchScalarGridSpec(
            num_scalar_prefetch=0,
            grid=(nb,),
            in_specs=[
                pl.BlockSpec((bt, d_out_p), lambda i: (i, 0)),          # y tile
                pl.BlockSpec((1, d_out_p), lambda i: (0, 0)),           # sum(y - b)
                pl.BlockSpec((1, d_out_p), lambda i: (0, 0)),           # sum((y - b)^2)
                pl.BlockSpec((1, d_out_p), lambda i: (0, 0)),           # bias
                pl.BlockSpec((1, d_out_p), lambda i: (0, 0)),           # gamma
                pl.BlockSpec((1, d_out_p), lambda i: (0, 0)),           # beta
            ],
            out_specs=pl.BlockSpec((bt, d_out_p), lambda i: (i, 0)),
        ),
        compiler_params=pltpu.CompilerParams(
            dimension_semantics=("parallel",),
            vmem_limit_bytes=_vmem_limit(est_s2)),
    )(y, s, ss, b, gamma, beta)
    return out_p[:, :d_out] if d_out_p != d_out else out_p


# ---------------------------------------------------------------------------
# Pure-JAX reference (mirrors the PyTorch forward in training mode)
# ---------------------------------------------------------------------------
def mi_projector_reference(x, params):
    bs, c, d = x.shape
    xf = x.reshape(bs, c * d)
    y = xf @ params["w"].T + params["b"]
    mean = jnp.mean(y, axis=0, keepdims=True)
    var = jnp.mean((y - mean) ** 2, axis=0, keepdims=True)     # biased variance
    h = (y - mean) * jax.lax.rsqrt(var + _BN_EPS) * params["gamma"] + params["beta"]
    return jax.nn.softmax(h, axis=1)


def make_params(key, d_in, d_out):
    k1, k2 = jax.random.split(key)
    bound = 1.0 / math.sqrt(d_in)
    return {
        # nn.Linear(d_in, d_out): weight (d_out, d_in), bias (d_out,)
        "w": jax.random.uniform(k1, (d_out, d_in), jnp.float32, -bound, bound),
        "b": jax.random.uniform(k2, (d_out,), jnp.float32, -bound, bound),
        # nn.BatchNorm1d(d_out) default affine params
        "gamma": jnp.ones((d_out,), jnp.float32),
        "beta": jnp.zeros((d_out,), jnp.float32),
    }


if __name__ == "__main__":
    bs, c, d = 8, 4, 16            # ecoder_dim1 = c * d = 64
    ecoder_dim2 = 32

    key = jax.random.PRNGKey(0)
    kx, kp = jax.random.split(key)

    x = jax.random.normal(kx, (bs, c, d), jnp.float32)
    params = make_params(kp, c * d, ecoder_dim2)
    prepared = prepare_mi_projector_params(params)

    ref = mi_projector_reference(x, params)

    # Primary (fused) path.
    out = mi_projector_forward(x, prepared)
    out = jax.block_until_ready(out)
    assert out.shape == (bs, ecoder_dim2), out.shape
    max_err = float(jnp.max(jnp.abs(out - ref)))
    assert jnp.allclose(out, ref, atol=1e-4, rtol=1e-4), max_err

    # Fallback (two-stage) path, exercised explicitly for coverage.
    out2 = mi_projector_forward(x, prepared, force_two_stage=True)
    out2 = jax.block_until_ready(out2)
    max_err2 = float(jnp.max(jnp.abs(out2 - ref)))
    assert jnp.allclose(out2, ref, atol=1e-4, rtol=1e-4), max_err2

    print("KERNEL_OK")
</pallas_src>

<mosaic_0001>
module attributes {stable_mosaic.version = 11 : i64} {
  func.func @kernel(%arg0: i32, %arg1: i32, %arg2: memref<8x64xf32, #tpu.memory_space<vmem>>, %arg3: memref<64x128xf32, #tpu.memory_space<vmem>>, %arg4: memref<1x128xf32, #tpu.memory_space<vmem>>, %arg5: memref<1x128xf32, #tpu.memory_space<vmem>>, %arg6: memref<1x128xf32, #tpu.memory_space<vmem>>, %arg7: memref<8x128xf32, #tpu.memory_space<vmem>>, %arg8: memref<8x128xf32, #tpu.memory_space<vmem>>, %arg9: memref<8x128xf32, #tpu.memory_space<vmem>>) attributes {dimension_semantics = [#tpu.dimension_semantics<arbitrary>, #tpu.dimension_semantics<arbitrary>], iteration_bounds = array<i64: 1, 1>, scalar_prefetch = 0 : i64, scratch_operands = 2 : i64, tpu.core_type = #tpu.core_type<tc>, window_params = [{transform_indices = @transform_0, window_bounds = array<i64: 8, 64>}, {transform_indices = @transform_1, window_bounds = array<i64: 64, 128>}, {pipeline_mode = #tpu.pipeline_mode<synchronous>, transform_indices = @transform_2, window_bounds = array<i64: 1, 128>}, {pipeline_mode = #tpu.pipeline_mode<synchronous>, transform_indices = @transform_3, window_bounds = array<i64: 1, 128>}, {pipeline_mode = #tpu.pipeline_mode<synchronous>, transform_indices = @transform_4, window_bounds = array<i64: 1, 128>}, {pipeline_mode = #tpu.pipeline_mode<synchronous>, transform_indices = @transform_5, window_bounds = array<i64: 8, 128>}]} {
    %c0_i32 = arith.constant 0 : i32
    %0 = arith.cmpi eq, %arg1, %c0_i32 : i32
    %1 = arith.extui %0 : i1 to i32
    %c0_i32_0 = arith.constant 0 : i32
    %2 = arith.cmpi ne, %1, %c0_i32_0 : i32
    scf.if %2 {
      %c0_13 = arith.constant 0 : index
      %c0_14 = arith.constant 0 : index
      %17 = vector.load %arg4[%c0_13, %c0_14] : memref<1x128xf32, #tpu.memory_space<vmem>>, vector<1x128xf32>
      %18 = vector.shape_cast %17 : vector<1x128xf32> to vector<1x128xf32>
      %19 = vector.broadcast %18 : vector<1x128xf32> to vector<8x128xf32>
      %c0_15 = arith.constant 0 : index
      %c0_16 = arith.constant 0 : index
      %20 = vector.load %arg8[%c0_15, %c0_16] : memref<8x128xf32, #tpu.memory_space<vmem>>, vector<8x128xf32>
      tpu.vector_store %arg8[%c0_15, %c0_16], %19 {strides = array<i32>} : memref<8x128xf32, #tpu.memory_space<vmem>>, vector<8x128xf32>,
    } else {
    }
    %c0 = arith.constant 0 : index
    %c0_1 = arith.constant 0 : index
    %3 = vector.load %arg8[%c0, %c0_1] : memref<8x128xf32, #tpu.memory_space<vmem>>, vector<8x128xf32>
    %c0_2 = arith.constant 0 : index
    %c0_3 = arith.constant 0 : index
    %4 = vector.load %arg2[%c0_2, %c0_3] : memref<8x64xf32, #tpu.memory_space<vmem>>, vector<8x64xf32>
    %c0_4 = arith.constant 0 : index
    %c0_5 = arith.constant 0 : index
    %5 = vector.load %arg3[%c0_4, %c0_5] : memref<64x128xf32, #tpu.memory_space<vmem>>, vector<64x128xf32>
    %cst = arith.constant dense<0.000000e+00> : vector<8x128xf32>
    %6 = tpu.matmul %4, %5, %cst {dimension_numbers = #tpu.dot_dimension_numbers<[1], [0], [0], [1], [0, 0, 1, 1], [], []>} : vector<8x64xf32>, vector<64x128xf32>, vector<8x128xf32> -> vector<8x128xf32>
    %7 = arith.addf %3, %6 : vector<8x128xf32>
    %c0_6 = arith.constant 0 : index
    %c0_7 = arith.constant 0 : index
    %8 = vector.load %arg8[%c0_6, %c0_7] : memref<8x128xf32, #tpu.memory_space<vmem>>, vector<8x128xf32>
    tpu.vector_store %arg8[%c0_6, %c0_7], %7 {strides = array<i32>} : memref<8x128xf32, #tpu.memory_space<vmem>>, vector<8x128xf32>,
    %c0_i32_8 = arith.constant 0 : i32
    %9 = arith.cmpi eq, %arg1, %c0_i32_8 : i32
    %10 = arith.extui %9 : i1 to i32
    %c0_i32_9 = arith.constant 0 : i32
    %11 = arith.cmpi ne, %10, %c0_i32_9 : i32
    scf.if %11 {
      %c8_i32 = arith.constant 8 : i32
      %17 = arith.muli %arg0, %c8_i32 : i32
      %18 = tpu.assume_multiple %17, 8 : i32
      %c0_13 = arith.constant 0 : index
      %c0_14 = arith.constant 0 : index
      %19 = vector.load %arg8[%c0_13, %c0_14] : memref<8x128xf32, #tpu.memory_space<vmem>>, vector<8x128xf32>
      %20 = arith.index_cast %18 : i32 to index
      %c0_15 = arith.constant 0 : index
      %21 = vector.load %arg9[%20, %c0_15] : memref<8x128xf32, #tpu.memory_space<vmem>>, vector<8x128xf32>
      tpu.vector_store %arg9[%20, %c0_15], %19 {strides = array<i32>} : memref<8x128xf32, #tpu.memory_space<vmem>>, vector<8x128xf32>,
    } else {
    }
    %c0_i32_10 = arith.constant 0 : i32
    %12 = arith.cmpi eq, %arg0, %c0_i32_10 : i32
    %c0_i32_11 = arith.constant 0 : i32
    %13 = arith.cmpi eq, %arg1, %c0_i32_11 : i32
    %14 = arith.andi %12, %13 : i1
    %15 = arith.extui %14 : i1 to i32
    %c0_i32_12 = arith.constant 0 : i32
    %16 = arith.cmpi ne, %15, %c0_i32_12 : i32
    scf.if %16 {
      %c0_13 = arith.constant 0 : index
      %c0_14 = arith.constant 0 : index
      %17 = vector.load %arg9[%c0_13, %c0_14] : memref<8x128xf32, #tpu.memory_space<vmem>>, vector<8x128xf32>
      %cst_15 = arith.constant dense<0.000000e+00> : vector<128xf32>
      %18 = vector.multi_reduction <add>, %17, %cst_15 [0] : vector<8x128xf32> to vector<128xf32>
      %19 = vector.shape_cast %18 : vector<128xf32> to vector<1x128xf32>
      %cst_16 = arith.constant 8.000000e+00 : f32
      %20 = vector.broadcast %cst_16 : f32 to vector<1x128xf32>
      %21 = arith.divf %19, %20 : vector<1x128xf32>
      %22 = vector.broadcast %21 : vector<1x128xf32> to vector<8x128xf32>
      %23 = arith.subf %17, %22 : vector<8x128xf32>
      %24 = arith.mulf %23, %23 : vector<8x128xf32>
      %cst_17 = arith.constant dense<0.000000e+00> : vector<128xf32>
      %25 = vector.multi_reduction <add>, %24, %cst_17 [0] : vector<8x128xf32> to vector<128xf32>
      %26 = vector.shape_cast %25 : vector<128xf32> to vector<1x128xf32>
      %cst_18 = arith.constant 8.000000e+00 : f32
      %27 = vector.broadcast %cst_18 : f32 to vector<1x128xf32>
      %28 = arith.divf %26, %27 : vector<1x128xf32>
      %c0_19 = arith.constant 0 : index
      %c0_20 = arith.constant 0 : index
      %29 = vector.load %arg5[%c0_19, %c0_20] : memref<1x128xf32, #tpu.memory_space<vmem>>, vector<1x128xf32>
      %cst_21 = arith.constant 9.99999974E-6 : f32
      %30 = vector.broadcast %cst_21 : f32 to vector<1x128xf32>
      %31 = arith.addf %28, %30 : vector<1x128xf32>
      %32 = math.rsqrt %31 : vector<1x128xf32>
      %33 = arith.mulf %29, %32 : vector<1x128xf32>
      %c0_22 = arith.constant 0 : index
      %c0_23 = arith.constant 0 : index
      %34 = vector.load %arg6[%c0_22, %c0_23] : memref<1x128xf32, #tpu.memory_space<vmem>>, vector<1x128xf32>
      %35 = arith.mulf %21, %33 : vector<1x128xf32>
      %36 = arith.subf %34, %35 : vector<1x128xf32>
      %37 = vector.broadcast %33 : vector<1x128xf32> to vector<8x128xf32>
      %38 = arith.mulf %17, %37 : vector<8x128xf32>
      %39 = vector.broadcast %36 : vector<1x128xf32> to vector<8x128xf32>
      %40 = arith.addf %38, %39 : vector<8x128xf32>
      %41 = tpu.iota {dimensions = array<i32: 1>} : vector<1x128xi32>
      %c32_i32 = arith.constant 32 : i32
      %42 = vector.broadcast %c32_i32 : i32 to vector<1x128xi32>
      %43 = arith.cmpi slt, %41, %42 : vector<1x128xi32>
      %cst_24 = arith.constant 0xFF800000 : f32
      %44 = vector.shape_cast %43 : vector<1x128xi1> to vector<1x128xi1>
      %45 = vector.broadcast %44 : vector<1x128xi1> to vector<8x128xi1>
      %46 = vector.broadcast %cst_24 : f32 to vector<8x128xf32>
      %47 = arith.select %45, %40, %46 : vector<8x128xi1>, vector<8x128xf32>
      %cst_25 = arith.constant dense<0xFF800000> : vector<8xf32>
      %48 = vector.multi_reduction <maximumf>, %47, %cst_25 [1] : vector<8x128xf32> to vector<8xf32>
      %49 = vector.shape_cast %48 : vector<8xf32> to vector<8x1xf32>
      %50 = vector.broadcast %49 : vector<8x1xf32> to vector<8x128xf32>
      %51 = arith.subf %47, %50 : vector<8x128xf32>
      %52 = math.exp %51 : vector<8x128xf32>
      %cst_26 = arith.constant dense<0.000000e+00> : vector<8xf32>
      %53 = vector.multi_reduction <add>, %52, %cst_26 [1] : vector<8x128xf32> to vector<8xf32>
      %54 = vector.shape_cast %53 : vector<8xf32> to vector<8x1xf32>
      %55 = tpu.reciprocal %54 : vector<8x1xf32> -> vector<8x1xf32>
      %56 = vector.broadcast %55 : vector<8x1xf32> to vector<8x128xf32>
      %57 = arith.mulf %52, %56 : vector<8x128xf32>
      %c0_27 = arith.constant 0 : index
      %c0_28 = arith.constant 0 : index
      %58 = vector.load %arg7[%c0_27, %c0_28] : memref<8x128xf32, #tpu.memory_space<vmem>>, vector<8x128xf32>
      tpu.vector_store %arg7[%c0_27, %c0_28], %57 {strides = array<i32>} : memref<8x128xf32, #tpu.memory_space<vmem>>, vector<8x128xf32>,
    } else {
    }
    return
  }
  func.func @transform_0(%arg0: i32, %arg1: i32) -> (i32, i32) {
    %c0_i32 = arith.constant 0 : i32
    return %arg0, %arg1 : i32, i32
  }
  func.func @transform_1(%arg0: i32, %arg1: i32) -> (i32, i32) {
    %c0_i32 = arith.constant 0 : i32
    %c0_i32_0 = arith.constant 0 : i32
    return %arg1, %c0_i32 : i32, i32
  }
  func.func @transform_2(%arg0: i32, %arg1: i32) -> (i32, i32) {
    %c0_i32 = arith.constant 0 : i32
    %c0_i32_0 = arith.constant 0 : i32
    %c0_i32_1 = arith.constant 0 : i32
    return %c0_i32, %c0_i32_0 : i32, i32
  }
  func.func @transform_3(%arg0: i32, %arg1: i32) -> (i32, i32) {
    %c0_i32 = arith.constant 0 : i32
    %c0_i32_0 = arith.constant 0 : i32
    %c0_i32_1 = arith.constant 0 : i32
    return %c0_i32, %c0_i32_0 : i32, i32
  }
  func.func @transform_4(%arg0: i32, %arg1: i32) -> (i32, i32) {
    %c0_i32 = arith.constant 0 : i32
    %c0_i32_0 = arith.constant 0 : i32
    %c0_i32_1 = arith.constant 0 : i32
    return %c0_i32, %c0_i32_0 : i32, i32
  }
  func.func @transform_5(%arg0: i32, %arg1: i32) -> (i32, i32) {
    %c0_i32 = arith.constant 0 : i32
    %c0_i32_0 = arith.constant 0 : i32
    %c0_i32_1 = arith.constant 0 : i32
    return %c0_i32, %c0_i32_0 : i32, i32
  }
}

</mosaic_0001>

<llo_original>
// kernel: tpu_custom_call.1
$region0: #{tpu_custom_call.1}
  #allocation0 [shape = 'u32[]', space=smem, size = 0x4, offset = 0x4, fixed_abs, tag = 'smem constant byte address 0x4 - core index']
  #allocation1 [shape = 'u32[144,128]{1,0:T(1,128)}', space=vmem, size = 0x12000, scoped, tag = 'internal scratch']
  #allocation2 [shape = 'f32[8,128]{1,0:T(8,128)}', space=vmem, size = 0x1000, scoped, tag = 'scratch operand']
  #allocation3 [shape = 'f32[8,128]{1,0:T(8,128)}', space=vmem, size = 0x1000, scoped, tag = 'scratch operand']
  %s0 = inlined_call_operand.hbm [shape: f32[8,64], index: 0, kind: input, shape index: {}]
  %s1 = inlined_call_operand.hbm [shape: f32[64,128], index: 1, kind: input, shape index: {}]
  %s2 = inlined_call_operand.vmem [shape: f32[1,128], index: 2, kind: input, shape index: {}]
  %s3 = inlined_call_operand.vmem [shape: f32[1,128], index: 3, kind: input, shape index: {}]
  %s4 = inlined_call_operand.vmem [shape: f32[1,128], index: 4, kind: input, shape index: {}]
  %s5 = inlined_call_operand.hbm [shape: f32[8,128], index: 5, kind: output, shape index: {}]
  %s6 = sld [smem:[#allocation0]]
  $region50: #{tpu_custom_call.1} parent=0
    _
  %s8 = ssub.s32 1, %s6
  %s9 = scalar_select 0, %s8, %s6
  $region1: #{tpu_custom_call.1} parent=0
    #allocation4 [shape = 'u8[4096]{0}', space=vmem, size = 0x1000, scoped, tag = 'input window, operand 0, single buffered']
    #allocation5 [shape = 's32[1]{0}', space=sflag, size = 0x4, scoped, tag = 'scoped memory for tpu_custom_call.1']
    #allocation6 [shape = 's32[1]{0}', space=sflag, size = 0x4, scoped, tag = 'scoped memory for tpu_custom_call.1']
    #allocation7 [shape = 'u8[32768]{0}', space=vmem, size = 0x8000, scoped, tag = 'input window, operand 1, single buffered']
    #allocation8 [shape = 's32[1]{0}', space=sflag, size = 0x4, scoped, tag = 'scoped memory for tpu_custom_call.1']
    #allocation9 [shape = 'u8[4096]{0}', space=vmem, size = 0x1000, scoped, tag = 'output window, operand 0, single buffered']
    %10 = vsyncpa [#allocation5], 0
    %11 = vsyncpa [#allocation8], 0
    %12 = vsyncpa [#allocation6], 0
    // Predicated region
    $region2: #{tpu_custom_call.1} parent=1 // pred_check
      _
    $region3: #{tpu_custom_call.1} parent=1 // pred_check_branch
      %14 = sbr.rel (0) target = $region5
    $region4: #{tpu_custom_call.1} parent=1 // pred_region
      %s16 = ssub.s32 128, 128
      %17 = vsyncadd [#allocation5], %s16
      %s19 = sshll.u32 [#allocation4], 4
      %s20 = int_to_ptr.vmem [resolvable:$true] %s19
      %22 = dma.hbm_to_vmem [thread:$0]  %s0, 128, %s20, [#allocation5]
    $region5: #{tpu_custom_call.1} parent=1 // pred_fallthru
      _
    // Predicated region
    $region6: #{tpu_custom_call.1} parent=1 // pred_check
      _
    $region7: #{tpu_custom_call.1} parent=1 // pred_check_branch
      %24 = sbr.rel (0) target = $region9
    $region8: #{tpu_custom_call.1} parent=1 // pred_region
      %s26 = ssub.s32 1024, 1024
      %27 = vsyncadd [#allocation8], %s26
      %s28 = sshll.u32 [#allocation7], 4
      %s29 = int_to_ptr.vmem [resolvable:$true] %s28
      %34 = dma.hbm_to_vmem [thread:$0]  %s1, 1024, %s29, [#allocation8], 128, 128, 8
    $region9: #{tpu_custom_call.1} parent=1 // pred_fallthru
      _
    // Predicated region
    $region10: #{tpu_custom_call.1} parent=1 // pred_check
      _
    $region11: #{tpu_custom_call.1} parent=1 // pred_check_branch
      %36 = sbr.rel (0) target = $region13
    $region12: #{tpu_custom_call.1} parent=1 // pred_region
      _
    $region13: #{tpu_custom_call.1} parent=1 // pred_fallthru
      _
    // Predicated region
    $region14: #{tpu_custom_call.1} parent=1 // pred_check
      _
    $region15: #{tpu_custom_call.1} parent=1 // pred_check_branch
      %38 = sbr.rel (0) target = $region17
    $region16: #{tpu_custom_call.1} parent=1 // pred_region
      _
    $region17: #{tpu_custom_call.1} parent=1 // pred_fallthru
      _
    // Predicated region
    $region18: #{tpu_custom_call.1} parent=1 // pred_check
      _
    $region19: #{tpu_custom_call.1} parent=1 // pred_check_branch
      %40 = sbr.rel (0) target = $region21
    $region20: #{tpu_custom_call.1} parent=1 // pred_region
      _
    $region21: #{tpu_custom_call.1} parent=1 // pred_fallthru
      _
    // Predicated region
    $region22: #{tpu_custom_call.1} parent=1 // pred_check
      _
    $region23: #{tpu_custom_call.1} parent=1 // pred_check_branch
      %42 = sbr.rel (0) target = $region25
    $region24: #{tpu_custom_call.1} parent=1 // pred_region
      %43 = dma.done [#allocation5], 128
    $region25: #{tpu_custom_call.1} parent=1 // pred_fallthru
      _
    // Predicated region
    $region26: #{tpu_custom_call.1} parent=1 // pred_check
      _
    $region27: #{tpu_custom_call.1} parent=1 // pred_check_branch
      %45 = sbr.rel (0) target = $region29
    $region28: #{tpu_custom_call.1} parent=1 // pred_region
      %46 = dma.done [#allocation8], 1024
    $region29: #{tpu_custom_call.1} parent=1 // pred_fallthru
      _
    %p47 = scmp.eq.s32.totalorder 0, 0
    // Predicated region
    $region30: #{tpu_custom_call.1} parent=1 // pred_check
      %p48 = pneg %p47
    $region31: #{tpu_custom_call.1} parent=1 // pred_check_branch
      %50 = sbr.rel (%p48) target = $region33
    $region32: #{tpu_custom_call.1} parent=1 // pred_region
      %v51 = vld [vmem:[%s2] sm:$0x1]
      %v53 = vlaneseq
      %v54 = vshrl.u32 %v53, 7
      %v55 = vsub.s32 0, %v54
      %v56 = vrot.slane %v51, %v55
      %58 = vst [vmem:[#allocation2] sm:$0xff] %v56
    $region33: #{tpu_custom_call.1} parent=1 // pred_fallthru
      _
    %v59 = vld [vmem:[#allocation2] sm:$0xff]
    %v60 = vld [vmem:[#allocation4] sm:$0xff]
    %v61 = vld [vmem:[#allocation7] sm:$0xff]
    %v62 = vld [vmem:[#allocation7 + $0x8] sm:$0xff]
    %v63 = vld [vmem:[#allocation7 + $0x10] sm:$0xff]
    %v64 = vld [vmem:[#allocation7 + $0x18] sm:$0xff]
    %v65 = vld [vmem:[#allocation7 + $0x20] sm:$0xff]
    %v66 = vld [vmem:[#allocation7 + $0x28] sm:$0xff]
    %v67 = vld [vmem:[#allocation7 + $0x30] sm:$0xff]
    %v68 = vld [vmem:[#allocation7 + $0x38] sm:$0xff]
    %vm69 = vcmask 523264
    %v71 = vsel %vm69, %v60, 0
    %73 = vmatprep.subr.mxu0 0.0
    %74 = vmatpush1.msra.mxu0 %v61
    %75 = vmatprep.subr.mxu0 0.0
    %76 = vmatpush1.msra.mxu0 %v62
    %77 = vmatprep.subr.mxu0 0.0
    %78 = vmatpush1.msra.mxu0 %v63
    %79 = vmatprep.subr.mxu0 0.0
    %80 = vmatpush1.msra.mxu0 %v64
    %81 = vmatprep.subr.mxu0 0.0
    %82 = vmatpush1.msra.mxu0 %v65
    %83 = vmatprep.subr.mxu0 0.0
    %84 = vmatpush1.msra.mxu0 %v66
    %85 = vmatprep.subr.mxu0 0.0
    %86 = vmatpush1.msra.mxu0 %v67
    %87 = vmatprep.subr.mxu0 0.0
    %88 = vmatpush1.msra.mxu0 %v68
    %89 = vmatprep.subr.mxu0 0.0
    %90 = vmatpush1.msra.mxu0 0.0
    %91 = vmatprep.subr.mxu0 0.0
    %92 = vmatpush1.msra.mxu0 0.0
    %93 = vmatprep.subr.mxu0 0.0
    %94 = vmatpush1.msra.mxu0 0.0
    %95 = vmatprep.subr.mxu0 0.0
    %96 = vmatpush1.msra.mxu0 0.0
    %97 = vmatprep.subr.mxu0 0.0
    %98 = vmatpush1.msra.mxu0 0.0
    %99 = vmatprep.subr.mxu0 0.0
    %100 = vmatpush1.msra.mxu0 0.0
    %101 = vmatprep.subr.mxu0 0.0
    %102 = vmatpush1.msra.mxu0 0.0
    %103 = vmatprep.subr.mxu0 0.0
    %104 = vmatpush1.msra.mxu0 0.0
    %105 = vmatprep.subr.mxu0 0.0
    %106 = vmatpush1.msra.mxu0 0.0
    %107 = vmatprep.subr.mxu0 0.0
    %108 = vmatpush1.msra.mxu0 0.0
    %109 = vmatprep.subr.mxu0 0.0
    %110 = vmatpush1.msra.mxu0 0.0
    %111 = vmatprep.subr.mxu0 0.0
    %112 = vmatpush1.msra.mxu0 0.0
    %113 = vmatprep.subr.mxu0 0.0
    %114 = vmatpush1.msra.mxu0 0.0
    %115 = vmatprep.subr.mxu0 0.0
    %116 = vmatpush1.msra.mxu0 0.0
    %117 = vmatprep.subr.mxu0 0.0
    %118 = vmatpush1.msra.mxu0 0.0
    %119 = vmatprep.subr.mxu0 0.0
    %120 = vmatpush1.msra.mxu0 0.0
    %121 = vmatprep.subr.mxu0 0.0
    %122 = vmatpush1.msra.mxu0 0.0
    %123 = vmatprep.subr.mxu0 0.0
    %124 = vmatpush1.msra.mxu0 0.0
    %125 = vmatprep.subr.mxu0 0.0
    %126 = vmatpush1.msra.mxu0 0.0
    %127 = vmatprep.subr.mxu0 0.0
    %128 = vmatpush1.msra.mxu0 0.0
    %129 = vmatprep.subr.mxu0 0.0
    %130 = vmatpush1.msra.mxu0 0.0
    %131 = vmatprep.subr.mxu0 0.0
    %132 = vmatpush1.msra.mxu0 0.0
    %133 = vmatprep.subr.mxu0 0.0
    %134 = vmatpush1.msra.mxu0 0.0
    %135 = vmatprep.subr.mxu0 0.0
    %136 = vmatpush1.msra.mxu0 0.0
    %137 = vmatprep.mubr.f32.mxu0 0.0
    %138 = vmatmul.mubr.f32.gmra.mrb[0].mxu0 %v71
    %v139 = vpop.f32.mrb[0].mxu0
    %v140 = vadd.f32 0.0, %v139
    %v141 = vpop.f32.mrb[0].mxu0
    %142 = vdwg.mxu0
    %v143 = vadd.f32 %v59, %v140
    %144 = vst [vmem:[#allocation2] sm:$0xff] %v143
    // Predicated region
    $region34: #{tpu_custom_call.1} parent=1 // pred_check
      %p145 = pneg %p47
    $region35: #{tpu_custom_call.1} parent=1 // pred_check_branch
      %147 = sbr.rel (%p145) target = $region37
    $region36: #{tpu_custom_call.1} parent=1 // pred_region
      %s148 = smul.u32 0, 8
      %v149 = vld [vmem:[#allocation2] sm:$0xff]
      %s150 = scalar_lea.vmem [#allocation3], %s148
      %151 = vst [vmem:[%s150] sm:$0xff] %v149
    $region37: #{tpu_custom_call.1} parent=1 // pred_fallthru
      _
    %p152 = scmp.eq.s32.totalorder 0, 0
    %p153 = pnand %p152, %p47
    %p154 = pneg %p153
    // Predicated region
    $region38: #{tpu_custom_call.1} parent=1 // pred_check
      _
    $region39: #{tpu_custom_call.1} parent=1 // pred_check_branch
      %156 = sbr.rel (%p153) target = $region41
    $region40: #{tpu_custom_call.1} parent=1 // pred_region
      %v157 = vld [vmem:[#allocation3] sm:$0xff]
      %v158 = vrot.slane %v157, 4
      %v159 = vadd.f32 %v157, %v158
      %v160 = vrot.slane %v159, 2
      %v161 = vadd.f32 %v159, %v160
      %v162 = vrot.slane %v161, 1
      %v163 = vadd.f32 %v161, %v162
      %v164 = vrcp.pop 8.0
      %v165 = vmul.f32 %v163, %v164
      %v166 = vsub.f32 %v157, %v165
      %v167 = vmul.f32 %v166, %v166
      %v168 = vrot.slane %v167, 4
      %v169 = vadd.f32 %v167, %v168
      %v170 = vrot.slane %v169, 2
      %v171 = vadd.f32 %v169, %v170
      %v172 = vrot.slane %v171, 1
      %v173 = vadd.f32 %v171, %v172
      %v174 = vmul.f32 %v173, %v164
      %v175 = vld [vmem:[%s3] sm:$0x1]
      %v176 = vadd.f32 %v174, 1e-05
      %v177 = vrsqrt.pop %v176
      %v178 = vmul.f32 %v175, %v177
      %v179 = vld [vmem:[%s4] sm:$0x1]
      %v180 = vmul.f32 %v165, %v178
      %v181 = vsub.f32 %v179, %v180
      %v183 = vlaneseq
      %v184 = vshrl.u32 %v183, 7
      %v185 = vsub.s32 0, %v184
      %v186 = vrot.slane %v178, %v185
      %v188 = vmul.f32 %v157, %v186
      %v190 = vlaneseq
      %v191 = vshrl.u32 %v190, 7
      %v192 = vsub.s32 0, %v191
      %v193 = vrot.slane %v181, %v192
      %v195 = vadd.f32 %v188, %v193
      %v196 = vlaneseq
      %v197 = vand.u32 %v196, 127
      %vm198 = vcmp.lt.s32.totalorder %v197, 32
      %v199 = vsel %vm198, 1, 0
      %vm200 = vcmp.eq.s32.totalorder %v199, 1
      %v201 = vsel %vm200, %v195, -inf
      %202 = vmax.xlane.f32.xlu0 %v201
      %v203 = vpop.xlane.xlu0 %202
      %v204 = vsub.f32 %v201, %v203
      %v205 = vmul.f32 %v204, 1.442695
      %v206 = vpow.pop %v205
      %207 = vadd.xlane.f32.xlu0 %v206
      %v208 = vpop.xlane.xlu0 %207
      %v209 = vrcp.pop %v208
      %v210 = vmul.f32 %v206, %v209
      %211 = vst [vmem:[#allocation9] sm:$0xff] %v210
    $region41: #{tpu_custom_call.1} parent=1 // pred_fallthru
      _
    // Predicated region
    $region42: #{tpu_custom_call.1} parent=1 // pred_check
      _
    $region43: #{tpu_custom_call.1} parent=1 // pred_check_branch
      %213 = sbr.rel (0) target = $region45
    $region44: #{tpu_custom_call.1} parent=1 // pred_region
      %s215 = ssub.s32 128, 128
      %216 = vsyncadd [#allocation6], %s215
      %s218 = sshll.u32 [#allocation9], 4
      %s219 = int_to_ptr.vmem [resolvable:$true] %s218
      %221 = dma.vmem_to_hbm [thread:$0]  %s219, 128, %s5, [#allocation6]
    $region45: #{tpu_custom_call.1} parent=1 // pred_fallthru
      _
    // Predicated region
    $region46: #{tpu_custom_call.1} parent=1 // pred_check
      _
    $region47: #{tpu_custom_call.1} parent=1 // pred_check_branch
      %223 = sbr.rel (0) target = $region49
    $region48: #{tpu_custom_call.1} parent=1 // pred_region
      %224 = dma.done [#allocation6], 128
    $region49: #{tpu_custom_call.1} parent=1 // pred_fallthru
      _
    %225 = vsyncpa [#allocation5], 1
    %226 = vsyncpa [#allocation8], 1
    %227 = vsyncpa [#allocation6], 1

</llo_original>
